<compile_context>
chip_gen: v6e
topology: v6e:2x2x1
jax: 0.10.0
libtpu: 0.0.40
codegen_flags: <defaults>
</compile_context>

<pallas_src>
import jax
import jax.numpy as jnp
from jax.experimental import pallas as pl
from jax.experimental.pallas import tpu as pltpu


_LANE = 128        # vreg lane width
_TILE_R = 2048     # rows per block: (2048, 128) f32 = 1 MiB; 2x-buffered in+out ~= 4 MiB VMEM
_SMALL_N = 65536   # below this (or lane-misaligned) the fused XLA sigmoid wins: no launch cost


def _round_up(a, m):
    return ((a + m - 1) // m) * m


def _logistic_kernel(params_ref, x_ref, o_ref):
    # params_ref: SMEM f32[2] = (weight, bias); x_ref / o_ref: (tile_r, 128) VMEM tiles.
    w = params_ref[0]
    b = params_ref[1]
    z = x_ref[...] * w + b                      # VPU, lane-dense fused mul-add
    # sigmoid(z) == 0.5 * tanh(0.5 * z) + 0.5 : one EUP push per vreg, exact.
    o_ref[...] = 0.5 * jnp.tanh(0.5 * z) + 0.5


def _logistic_pallas(x_flat, w_s, b_s):
    """x_flat: [N] f32 with N % 128 == 0 and N >= _SMALL_N.  Returns [N] f32."""
    n = x_flat.shape[0]
    rows = n // _LANE                       # exact: [N] -> [rows, 128] reshape is metadata only

    if rows > _TILE_R:
        tile_r = _TILE_R
        # Last block may be ragged; Pallas masks OOB reads / drops OOB writes.  The
        # garbage lanes of the ragged block flow through tanh but are discarded — do
        # NOT later reduce over y2d without masking.
        grid_rows = pl.cdiv(rows, tile_r)
    else:
        # Single-block batch: split into 2 grid steps so v7x's 2 TensorCores both run.
        tile_r = _round_up(pl.cdiv(rows, 2), 8)
        grid_rows = pl.cdiv(rows, tile_r)

    x2d = x_flat.reshape(rows, _LANE)       # metadata reshape, no pad / extra HBM pass
    params = jnp.stack([w_s, b_s]).astype(jnp.float32)   # [2] scalars -> SMEM

    y2d = pl.pallas_call(
        _logistic_kernel,
        out_shape=jax.ShapeDtypeStruct((rows, _LANE), x_flat.dtype),
        grid_spec=pl.GridSpec(
            grid=(grid_rows,),
            in_specs=[
                # weight/bias on the scalar path (SMEM): no VMEM tile, no DMA slot.
                pl.BlockSpec(memory_space=pltpu.MemorySpace.SMEM),
                pl.BlockSpec((tile_r, _LANE), lambda i: (i, 0)),
            ],
            out_specs=pl.BlockSpec((tile_r, _LANE), lambda i: (i, 0)),
        ),
        compiler_params=pltpu.CompilerParams(
            dimension_semantics=("parallel",),
        ),
        cost_estimate=pl.CostEstimate(
            flops=4 * n, transcendentals=n, bytes_accessed=8 * n),
    )(params, x2d)

    return y2d.reshape(n)                   # metadata reshape back


def logistic_regression_forward(x, w, b):
    """forward(x) = sigmoid(x @ W^T + b) for Linear(1, 1).

    x: [..., 1] f32 (PyTorch Linear input layout), w: [1, 1] f32, b: [1] f32.
    Returns an array with the same shape as x.
    """
    orig_shape = x.shape
    assert orig_shape[-1] == 1, "Linear(1, 1) expects last dim == 1"
    x_flat = x.reshape(-1)
    n = x_flat.shape[0]
    w_s = w.reshape(())
    b_s = b.reshape(())

    if n < _SMALL_N or (n % _LANE) != 0:
        # Small or lane-misaligned batches: the single fused XLA elementwise op is
        # already mem-bound optimal; a pallas_call would only add launch overhead and
        # pad/slice HBM copies.
        # TODO(synk): for very large misaligned N, run the 128-aligned prefix through
        # the kernel and only the <128-element tail through XLA.
        return jax.nn.sigmoid(x * w_s + b_s)

    y_flat = _logistic_pallas(x_flat, w_s, b_s)
    return y_flat.reshape(orig_shape)


if __name__ == "__main__":
    key = jax.random.PRNGKey(0)
    kx, kw, kb, kx2, kx3 = jax.random.split(key, 5)

    # Parameters mirroring torch.nn.Linear(1, 1): weight [1, 1], bias [1]
    w = jax.random.uniform(kw, (1, 1), dtype=jnp.float32, minval=-1.0, maxval=1.0)
    b = jax.random.uniform(kb, (1,), dtype=jnp.float32, minval=-1.0, maxval=1.0)

    # --- Module-typical small batch: XLA fast path (exact math, no kernel launch)
    x_small = jax.random.normal(kx, (8, 1), dtype=jnp.float32)
    y_small = logistic_regression_forward(x_small, w, b)
    jax.block_until_ready(y_small)
    y_small_ref = jax.nn.sigmoid(x_small @ w.T + b)
    assert y_small.shape == y_small_ref.shape
    assert jnp.allclose(y_small, y_small_ref, atol=1e-6), "small-batch path mismatch"

    # --- Pallas path #1: 131072 elems -> 1024 lane-rows -> single-block batch split
    #     into 2 grid steps (exercises the v7x two-core split + pad-free reshapes).
    n1 = 131072
    x1 = jax.random.normal(kx2, (n1, 1), dtype=jnp.float32)
    y1 = logistic_regression_forward(x1, w, b)
    jax.block_until_ready(y1)
    y1_ref = jax.nn.sigmoid(x1 @ w.T + b)
    assert y1.shape == y1_ref.shape
    assert jnp.allclose(y1, y1_ref, atol=1e-5), "Pallas path (aligned) mismatch"

    # --- Pallas path #2: 2500 lane-rows -> grid of 2 with a ragged 452-row last block
    #     (exercises masked OOB handling with zero host-side pad/slice).
    n2 = 128 * 2500
    x2 = jax.random.normal(kx3, (n2, 1), dtype=jnp.float32)
    y2 = logistic_regression_forward(x2, w, b)
    jax.block_until_ready(y2)
    y2_ref = jax.nn.sigmoid(x2 @ w.T + b)
    assert y2.shape == y2_ref.shape
    assert jnp.allclose(y2, y2_ref, atol=1e-5), "Pallas path (ragged) mismatch"

    print("KERNEL_OK")
</pallas_src>

<mosaic_0001>
module attributes {stable_mosaic.version = 11 : i64} {
  func.func @_logistic_kernel(%arg0: i32, %arg1: memref<2xf32, #tpu.memory_space<smem>>, %arg2: memref<512x128xf32, #tpu.memory_space<vmem>>, %arg3: memref<512x128xf32, #tpu.memory_space<vmem>>) attributes {dimension_semantics = [#tpu.dimension_semantics<parallel>], iteration_bounds = array<i64: 2>, scalar_prefetch = 0 : i64, scratch_operands = 0 : i64, tpu.core_type = #tpu.core_type<tc>, window_params = [{transform_indices = @transform_0, window_bounds = array<i64: 2>}, {transform_indices = @transform_1, window_bounds = array<i64: 512, 128>}, {transform_indices = @transform_2, window_bounds = array<i64: 512, 128>}]} {
    %c0 = arith.constant 0 : index
    %0 = memref.load %arg1[%c0] : memref<2xf32, #tpu.memory_space<smem>>
    %c1 = arith.constant 1 : index
    %1 = memref.load %arg1[%c1] : memref<2xf32, #tpu.memory_space<smem>>
    %c0_0 = arith.constant 0 : index
    %c0_1 = arith.constant 0 : index
    %2 = vector.load %arg2[%c0_0, %c0_1] : memref<512x128xf32, #tpu.memory_space<vmem>>, vector<512x128xf32>
    %3 = vector.broadcast %0 : f32 to vector<512x128xf32>
    %4 = arith.mulf %2, %3 : vector<512x128xf32>
    %5 = vector.broadcast %1 : f32 to vector<512x128xf32>
    %6 = arith.addf %4, %5 : vector<512x128xf32>
    %cst = arith.constant 5.000000e-01 : f32
    %7 = vector.broadcast %cst : f32 to vector<512x128xf32>
    %8 = arith.mulf %7, %6 : vector<512x128xf32>
    %9 = math.tanh %8 : vector<512x128xf32>
    %cst_2 = arith.constant 5.000000e-01 : f32
    %10 = vector.broadcast %cst_2 : f32 to vector<512x128xf32>
    %11 = arith.mulf %10, %9 : vector<512x128xf32>
    %cst_3 = arith.constant 5.000000e-01 : f32
    %12 = vector.broadcast %cst_3 : f32 to vector<512x128xf32>
    %13 = arith.addf %11, %12 : vector<512x128xf32>
    %c0_4 = arith.constant 0 : index
    %c0_5 = arith.constant 0 : index
    %14 = vector.load %arg3[%c0_4, %c0_5] : memref<512x128xf32, #tpu.memory_space<vmem>>, vector<512x128xf32>
    tpu.vector_store %arg3[%c0_4, %c0_5], %13 {strides = array<i32>} : memref<512x128xf32, #tpu.memory_space<vmem>>, vector<512x128xf32>,
    return
  }
  func.func @transform_0(%arg0: i32) -> i32 {
    %c0_i32 = arith.constant 0 : i32
    %c0_i32_0 = arith.constant 0 : i32
    return %c0_i32 : i32
  }
  func.func @transform_1(%arg0: i32) -> (i32, i32) {
    %c0_i32 = arith.constant 0 : i32
    %c0_i32_0 = arith.constant 0 : i32
    return %arg0, %c0_i32 : i32, i32
  }
  func.func @transform_2(%arg0: i32) -> (i32, i32) {
    %c0_i32 = arith.constant 0 : i32
    %c0_i32_0 = arith.constant 0 : i32
    return %arg0, %c0_i32 : i32, i32
  }
}

</mosaic_0001>

<llo_original>
// kernel: tpu_custom_call.1
$region0: #{tpu_custom_call.1}
  #allocation0 [shape = 'u32[]', space=smem, size = 0x4, offset = 0x4, fixed_abs, tag = 'smem constant byte address 0x4 - core index']
  #allocation1 [shape = 'u32[144,128]{1,0:T(1,128)}', space=vmem, size = 0x12000, scoped, tag = 'internal scratch']
  %s0 = inlined_call_operand.hbm [shape: f32[2], index: 0, kind: input, shape index: {}]
  %s1 = inlined_call_operand.hbm [shape: f32[1024,128], index: 1, kind: input, shape index: {}]
  %s2 = inlined_call_operand.hbm [shape: f32[1024,128], index: 2, kind: output, shape index: {}]
  %s3 = sld [smem:[#allocation0]]
  $region49: #{tpu_custom_call.1} parent=0
    _
  %s5 = ssub.s32 1, %s3
  %s6 = scalar_select 0, %s5, %s3
  $region1: #{tpu_custom_call.1} parent=0
    #allocation2 [shape = 'u8[512]{0}', space=smem, size = 0x200, scoped, tag = 'input window, operand 0, single buffered']
    #allocation3 [shape = 's32[2]{0}', space=sflag, size = 0x8, scoped, tag = 'scoped memory for tpu_custom_call.1']
    #allocation4 [shape = 's32[2]{0}', space=sflag, size = 0x8, scoped, tag = 'scoped memory for tpu_custom_call.1']
    #allocation5 [shape = 's32[2]{0}', space=sflag, size = 0x8, scoped, tag = 'scoped memory for tpu_custom_call.1']
    #allocation6 [shape = 'u8[524288]{0}', space=vmem, size = 0x80000, scoped, tag = 'input window, operand 1']
    #allocation7 [shape = 'u8[524288]{0}', space=vmem, size = 0x80000, scoped, tag = 'output window, operand 0']
    %7 = vsyncpa [#allocation5], 0
    %8 = vsyncpa [#allocation3], 0
    %s9 = scalar_lea.sflag [#allocation3], 1
    %10 = vsyncpa %s9, 0
    %11 = vsyncpa [#allocation4], 0
    %s12 = scalar_lea.sflag [#allocation4], 1
    %13 = vsyncpa %s12, 0
    loop: start=0, step=1, limit=4
    $region2: #{tpu_custom_call.1} parent=1 // loop_pre_header
      _
    $region3: #{tpu_custom_call.1} parent=1 // loop_header
      %s15 = sphi 0, %s19
      %p16 = scmp.ge.s32.totalorder %s15, 4
      %s23 = sphi 0, %s23
      %s25 = sphi 0, %s23
      %s26 = sphi 0, %s25
      %s40 = sphi 0, %s26
      %s46 = sphi 0, %s48
      %s49 = sphi 0, %s46
      %s50 = sphi 0, %s49
      %s66 = sphi 0, %s50
      %s72 = sphi 0, %s74
      %s75 = sphi 0, %s72
      %s76 = sphi 0, %s75
      %s92 = sphi 0, %s76
    $region4: #{tpu_custom_call.1} parent=1 // loop_header_branch
      %18 = sbr.rel (%p16) target = $region8
    $region5: #{tpu_custom_call.1} parent=1 // loop_body
      %s20 = ssub.s32 %s15, 1
      %s21 = ssub.s32 %s15, 2
      %s22 = sadd.s32 %s15, 1
      %s24 = sadd.s32 %s23, 1
      %p27 = scmp.eq.s32.totalorder %s15, 1
      %p28 = scmp.ne.s32.totalorder %s23, %s25
      %p29 = scmp.eq.s32.totalorder %s15, 0
      %p30 = por %p28, %p29
      %p31 = scmp.ne.s32.totalorder %s23, %s25
      %p32 = scmp.eq.s32.totalorder %s20, 1
      %p33 = por %p31, %p32
      %p34 = scmp.ne.s32.totalorder %s25, %s26
      %p35 = scmp.eq.s32.totalorder %s20, 0
      %p36 = por %p34, %p35
      %p37 = scmp.ne.s32.totalorder %s25, %s26
      %p38 = scmp.eq.s32.totalorder %s21, 1
      %p39 = por %p37, %p38
      %p41 = scmp.ne.s32.totalorder %s26, %s40
      %p42 = scmp.eq.s32.totalorder %s21, 0
      %p43 = por %p41, %p42
      %s44 = ssub.s32 %s15, %s22
      %p45 = scmp.eq.s32.totalorder %s44, 0
      %s47 = sadd.s32 %s46, 1
      %s48 = scalar_select %p45, %s46, %s47
      %p51 = pneg %p45
      %p52 = scmp.eq.s32.totalorder %s15, 1
      %p53 = por %p51, %p52
      %p54 = scmp.ne.s32.totalorder %s46, %s49
      %p55 = scmp.eq.s32.totalorder %s15, 0
      %p56 = por %p54, %p55
      %p57 = scmp.ne.s32.totalorder %s46, %s49
      %p58 = scmp.eq.s32.totalorder %s20, 1
      %p59 = por %p57, %p58
      %p60 = scmp.ne.s32.totalorder %s49, %s50
      %p61 = scmp.eq.s32.totalorder %s20, 0
      %p62 = por %p60, %p61
      %p63 = scmp.ne.s32.totalorder %s49, %s50
      %p64 = scmp.eq.s32.totalorder %s21, 1
      %p65 = por %p63, %p64
      %p67 = scmp.ne.s32.totalorder %s50, %s66
      %p68 = scmp.eq.s32.totalorder %s21, 0
      %p69 = por %p67, %p68
      %s70 = ssub.s32 %s15, %s22
      %p71 = scmp.eq.s32.totalorder %s70, 0
      %s73 = sadd.s32 %s72, 1
      %s74 = scalar_select %p71, %s72, %s73
      %p77 = pneg %p71
      %p78 = scmp.eq.s32.totalorder %s15, 1
      %p79 = por %p77, %p78
      %p80 = scmp.ne.s32.totalorder %s72, %s75
      %p81 = scmp.eq.s32.totalorder %s15, 0
      %p82 = por %p80, %p81
      %p83 = scmp.ne.s32.totalorder %s72, %s75
      %p84 = scmp.eq.s32.totalorder %s20, 1
      %p85 = por %p83, %p84
      %p86 = scmp.ne.s32.totalorder %s75, %s76
      %p87 = scmp.eq.s32.totalorder %s20, 0
      %p88 = por %p86, %p87
      %p89 = scmp.ne.s32.totalorder %s75, %s76
      %p90 = scmp.eq.s32.totalorder %s21, 1
      %p91 = por %p89, %p90
      %p93 = scmp.ne.s32.totalorder %s76, %s92
      %p94 = scmp.eq.s32.totalorder %s21, 0
      %p95 = por %p93, %p94
      %p96 = scmp.le.s32.totalorder 1, %s15
      %p97 = scmp.lt.s32.totalorder %s15, 3
      %p98 = pnand %p96, %p97
      %p99 = pneg %p98
      // Predicated region
      $region9: #{tpu_custom_call.1} parent=5 // pred_check
        _
      $region10: #{tpu_custom_call.1} parent=5 // pred_check_branch
        %101 = sbr.rel (%p98) target = $region12
      $region11: #{tpu_custom_call.1} parent=5 // pred_region
        %s102 = ssub.s32 %s15, 1
        // Predicated region
        $region13: #{tpu_custom_call.1} parent=11 // pred_check
          %p103 = pneg %p36
        $region14: #{tpu_custom_call.1} parent=11 // pred_check_branch
          %105 = sbr.rel (%p103) target = $region16
        $region15: #{tpu_custom_call.1} parent=11 // pred_region
          %s107 = ssub.s32 16, 16
          %108 = vsyncadd [#allocation5], %s107
          %111 = dma.hbm_to_smem %s0, 16, [#allocation2], [#allocation5]
        $region16: #{tpu_custom_call.1} parent=11 // pred_fallthru
          _
      $region12: #{tpu_custom_call.1} parent=5 // pred_fallthru
        _
      %p112 = scmp.lt.s32.totalorder %s15, 2
      // Predicated region
      $region17: #{tpu_custom_call.1} parent=5 // pred_check
        %p113 = pneg %p112
      $region18: #{tpu_custom_call.1} parent=5 // pred_check_branch
        %115 = sbr.rel (%p113) target = $region20
      $region19: #{tpu_custom_call.1} parent=5 // pred_region
        // Predicated region
        $region21: #{tpu_custom_call.1} parent=19 // pred_check
          %p116 = pneg %p56
        $region22: #{tpu_custom_call.1} parent=19 // pred_check_branch
          %118 = sbr.rel (%p116) target = $region24
        $region23: #{tpu_custom_call.1} parent=19 // pred_region
          %s119 = sand.u32 %s46, 1
          %s120 = scalar_lea.sflag [#allocation3], %s119
          %s121 = sand.u32 %s46, 1
          %s122 = smul.addr %s121, 512
          %s123 = scalar_lea.vmem [#allocation6], %s122
          %s124 = smul.u32 64, %s15
          %s126 = ssub.s32 8192, 8192
          %127 = vsyncadd %s120, %s126
          %s128 = smul.addr %s124, 128
          %s129 = scalar_lea.hbm %s1, %s128
          %s130 = sshll.u32 %s123, 4
          %s131 = int_to_ptr.vmem [resolvable:$true] %s130
          %136 = dma.hbm_to_vmem [thread:$0]  %s129, 8192, %s131, %s120, 128, 128, 8
        $region24: #{tpu_custom_call.1} parent=19 // pred_fallthru
          _
      $region20: #{tpu_custom_call.1} parent=5 // pred_fallthru
        _
      %p137 = scmp.le.s32.totalorder 1, %s15
      %p138 = scmp.lt.s32.totalorder %s15, 3
      %p139 = pnand %p137, %p138
      %p140 = pneg %p139
      // Predicated region
      $region25: #{tpu_custom_call.1} parent=5 // pred_check
        _
      $region26: #{tpu_custom_call.1} parent=5 // pred_check_branch
        %142 = sbr.rel (%p139) target = $region28
      $region27: #{tpu_custom_call.1} parent=5 // pred_region
        %s143 = ssub.s32 %s15, 1
        // Predicated region
        $region29: #{tpu_custom_call.1} parent=27 // pred_check
          %p144 = pneg %p36
        $region30: #{tpu_custom_call.1} parent=27 // pred_check_branch
          %146 = sbr.rel (%p144) target = $region32
        $region31: #{tpu_custom_call.1} parent=27 // pred_region
          %147 = dma.done [#allocation5], 16
        $region32: #{tpu_custom_call.1} parent=27 // pred_fallthru
          _
        %s148 = sand.u32 %s49, 1
        %s149 = scalar_lea.sflag [#allocation3], %s148
        %s150 = sand.u32 %s49, 1
        %s151 = smul.addr %s150, 512
        %s152 = scalar_lea.vmem [#allocation6], %s151
        // Predicated region
        $region33: #{tpu_custom_call.1} parent=27 // pred_check
          %p153 = pneg %p62
        $region34: #{tpu_custom_call.1} parent=27 // pred_check_branch
          %155 = sbr.rel (%p153) target = $region36
        $region35: #{tpu_custom_call.1} parent=27 // pred_region
          %156 = dma.done %s149, 8192
        $region36: #{tpu_custom_call.1} parent=27 // pred_fallthru
          _
        %157 = sfence
        %p158 = pneg %p36
        %p159 = pneg %p33
        %s160 = sand.u32 %s49, 1
        %s161 = scalar_lea.sflag [#allocation3], %s160
        %s162 = sand.u32 %s49, 1
        %s163 = smul.addr %s162, 512
        %s164 = scalar_lea.vmem [#allocation6], %s163
        %p165 = pneg %p62
        %p166 = pneg %p59
        %p167 = pneg %p88
        %p168 = pneg %p85
        %s169 = sand.u32 %s75, 1
        %s170 = scalar_lea.sflag [#allocation4], %s169
        %s171 = sand.u32 %s75, 1
        %s172 = smul.addr %s171, 512
        %s173 = scalar_lea.vmem [#allocation7], %s172
        %s174 = smul.u32 64, %s20
        %s175 = smul.u32 64, %s20
        %s176 = sld [smem:[#allocation2]]
        %s177 = sld [smem:[#allocation2 + $0x1]]
        %v178 = vld [vmem:[%s152] sm:$0xff]
        %v179 = vld [vmem:[%s152 + $0x8] sm:$0xff]
        %v180 = vld [vmem:[%s152 + $0x10] sm:$0xff]
        %v181 = vld [vmem:[%s152 + $0x18] sm:$0xff]
        %v182 = vld [vmem:[%s152 + $0x20] sm:$0xff]
        %v183 = vld [vmem:[%s152 + $0x28] sm:$0xff]
        %v184 = vld [vmem:[%s152 + $0x30] sm:$0xff]
        %v185 = vld [vmem:[%s152 + $0x38] sm:$0xff]
        %v186 = vld [vmem:[%s152 + $0x40] sm:$0xff]
        %v187 = vld [vmem:[%s152 + $0x48] sm:$0xff]
        %v188 = vld [vmem:[%s152 + $0x50] sm:$0xff]
        %v189 = vld [vmem:[%s152 + $0x58] sm:$0xff]
        %v190 = vld [vmem:[%s152 + $0x60] sm:$0xff]
        %v191 = vld [vmem:[%s152 + $0x68] sm:$0xff]
        %v192 = vld [vmem:[%s152 + $0x70] sm:$0xff]
        %v193 = vld [vmem:[%s152 + $0x78] sm:$0xff]
        %v194 = vld [vmem:[%s152 + $0x80] sm:$0xff]
        %v195 = vld [vmem:[%s152 + $0x88] sm:$0xff]
        %v196 = vld [vmem:[%s152 + $0x90] sm:$0xff]
        %v197 = vld [vmem:[%s152 + $0x98] sm:$0xff]
        %v198 = vld [vmem:[%s152 + $0xa0] sm:$0xff]
        %v199 = vld [vmem:[%s152 + $0xa8] sm:$0xff]
        %v200 = vld [vmem:[%s152 + $0xb0] sm:$0xff]
        %v201 = vld [vmem:[%s152 + $0xb8] sm:$0xff]
        %v202 = vld [vmem:[%s152 + $0xc0] sm:$0xff]
        %v203 = vld [vmem:[%s152 + $0xc8] sm:$0xff]
        %v204 = vld [vmem:[%s152 + $0xd0] sm:$0xff]
        %v205 = vld [vmem:[%s152 + $0xd8] sm:$0xff]
        %v206 = vld [vmem:[%s152 + $0xe0] sm:$0xff]
        %v207 = vld [vmem:[%s152 + $0xe8] sm:$0xff]
        %v208 = vld [vmem:[%s152 + $0xf0] sm:$0xff]
        %v209 = vld [vmem:[%s152 + $0xf8] sm:$0xff]
        %v210 = vld [vmem:[%s152 + $0x100] sm:$0xff]
        %v211 = vld [vmem:[%s152 + $0x108] sm:$0xff]
        %v212 = vld [vmem:[%s152 + $0x110] sm:$0xff]
        %v213 = vld [vmem:[%s152 + $0x118] sm:$0xff]
        %v214 = vld [vmem:[%s152 + $0x120] sm:$0xff]
        %v215 = vld [vmem:[%s152 + $0x128] sm:$0xff]
        %v216 = vld [vmem:[%s152 + $0x130] sm:$0xff]
        %v217 = vld [vmem:[%s152 + $0x138] sm:$0xff]
        %v218 = vld [vmem:[%s152 + $0x140] sm:$0xff]
        %v219 = vld [vmem:[%s152 + $0x148] sm:$0xff]
        %v220 = vld [vmem:[%s152 + $0x150] sm:$0xff]
        %v221 = vld [vmem:[%s152 + $0x158] sm:$0xff]
        %v222 = vld [vmem:[%s152 + $0x160] sm:$0xff]
        %v223 = vld [vmem:[%s152 + $0x168] sm:$0xff]
        %v224 = vld [vmem:[%s152 + $0x170] sm:$0xff]
        %v225 = vld [vmem:[%s152 + $0x178] sm:$0xff]
        %v226 = vld [vmem:[%s152 + $0x180] sm:$0xff]
        %v227 = vld [vmem:[%s152 + $0x188] sm:$0xff]
        %v228 = vld [vmem:[%s152 + $0x190] sm:$0xff]
        %v229 = vld [vmem:[%s152 + $0x198] sm:$0xff]
        %v230 = vld [vmem:[%s152 + $0x1a0] sm:$0xff]
        %v231 = vld [vmem:[%s152 + $0x1a8] sm:$0xff]
        %v232 = vld [vmem:[%s152 + $0x1b0] sm:$0xff]
        %v233 = vld [vmem:[%s152 + $0x1b8] sm:$0xff]
        %v234 = vld [vmem:[%s152 + $0x1c0] sm:$0xff]
        %v235 = vld [vmem:[%s152 + $0x1c8] sm:$0xff]
        %v236 = vld [vmem:[%s152 + $0x1d0] sm:$0xff]
        %v237 = vld [vmem:[%s152 + $0x1d8] sm:$0xff]
        %v238 = vld [vmem:[%s152 + $0x1e0] sm:$0xff]
        %v239 = vld [vmem:[%s152 + $0x1e8] sm:$0xff]
        %v240 = vld [vmem:[%s152 + $0x1f0] sm:$0xff]
        %v241 = vld [vmem:[%s152 + $0x1f8] sm:$0xff]
        %v242 = vstv %s176
        %v243 = vmul.f32 %v178, %v242
        %v244 = vmul.f32 %v179, %v242
        %v245 = vmul.f32 %v180, %v242
        %v246 = vmul.f32 %v181, %v242
        %v247 = vmul.f32 %v182, %v242
        %v248 = vmul.f32 %v183, %v242
        %v249 = vmul.f32 %v184, %v242
        %v250 = vmul.f32 %v185, %v242
        %v251 = vmul.f32 %v186, %v242
        %v252 = vmul.f32 %v187, %v242
        %v253 = vmul.f32 %v188, %v242
        %v254 = vmul.f32 %v189, %v242
        %v255 = vmul.f32 %v190, %v242
        %v256 = vmul.f32 %v191, %v242
        %v257 = vmul.f32 %v192, %v242
        %v258 = vmul.f32 %v193, %v242
        %v259 = vmul.f32 %v194, %v242
        %v260 = vmul.f32 %v195, %v242
        %v261 = vmul.f32 %v196, %v242
        %v262 = vmul.f32 %v197, %v242
        %v263 = vmul.f32 %v198, %v242
        %v264 = vmul.f32 %v199, %v242
        %v265 = vmul.f32 %v200, %v242
        %v266 = vmul.f32 %v201, %v242
        %v267 = vmul.f32 %v202, %v242
        %v268 = vmul.f32 %v203, %v242
        %v269 = vmul.f32 %v204, %v242
        %v270 = vmul.f32 %v205, %v242
        %v271 = vmul.f32 %v206, %v242
        %v272 = vmul.f32 %v207, %v242
        %v273 = vmul.f32 %v208, %v242
        %v274 = vmul.f32 %v209, %v242
        %v275 = vmul.f32 %v210, %v242
        %v276 = vmul.f32 %v211, %v242
        %v277 = vmul.f32 %v212, %v242
        %v278 = vmul.f32 %v213, %v242
        %v279 = vmul.f32 %v214, %v242
        %v280 = vmul.f32 %v215, %v242
        %v281 = vmul.f32 %v216, %v242
        %v282 = vmul.f32 %v217, %v242
        %v283 = vmul.f32 %v218, %v242
        %v284 = vmul.f32 %v219, %v242
        %v285 = vmul.f32 %v220, %v242
        %v286 = vmul.f32 %v221, %v242
        %v287 = vmul.f32 %v222, %v242
        %v288 = vmul.f32 %v223, %v242
        %v289 = vmul.f32 %v224, %v242
        %v290 = vmul.f32 %v225, %v242
        %v291 = vmul.f32 %v226, %v242
        %v292 = vmul.f32 %v227, %v242
        %v293 = vmul.f32 %v228, %v242
        %v294 = vmul.f32 %v229, %v242
        %v295 = vmul.f32 %v230, %v242
        %v296 = vmul.f32 %v231, %v242
        %v297 = vmul.f32 %v232, %v242
        %v298 = vmul.f32 %v233, %v242
        %v299 = vmul.f32 %v234, %v242
        %v300 = vmul.f32 %v235, %v242
        %v301 = vmul.f32 %v236, %v242
        %v302 = vmul.f32 %v237, %v242
        %v303 = vmul.f32 %v238, %v242
        %v304 = vmul.f32 %v239, %v242
        %v305 = vmul.f32 %v240, %v242
        %v306 = vmul.f32 %v241, %v242
        %v307 = vstv %s177
        %v308 = vadd.f32 %v243, %v307
        %v309 = vadd.f32 %v244, %v307
        %v310 = vadd.f32 %v245, %v307
        %v311 = vadd.f32 %v246, %v307
        %v312 = vadd.f32 %v247, %v307
        %v313 = vadd.f32 %v248, %v307
        %v314 = vadd.f32 %v249, %v307
        %v315 = vadd.f32 %v250, %v307
        %v316 = vadd.f32 %v251, %v307
        %v317 = vadd.f32 %v252, %v307
        %v318 = vadd.f32 %v253, %v307
        %v319 = vadd.f32 %v254, %v307
        %v320 = vadd.f32 %v255, %v307
        %v321 = vadd.f32 %v256, %v307
        %v322 = vadd.f32 %v257, %v307
        %v323 = vadd.f32 %v258, %v307
        %v324 = vadd.f32 %v259, %v307
        %v325 = vadd.f32 %v260, %v307
        %v326 = vadd.f32 %v261, %v307
        %v327 = vadd.f32 %v262, %v307
        %v328 = vadd.f32 %v263, %v307
        %v329 = vadd.f32 %v264, %v307
        %v330 = vadd.f32 %v265, %v307
        %v331 = vadd.f32 %v266, %v307
        %v332 = vadd.f32 %v267, %v307
        %v333 = vadd.f32 %v268, %v307
        %v334 = vadd.f32 %v269, %v307
        %v335 = vadd.f32 %v270, %v307
        %v336 = vadd.f32 %v271, %v307
        %v337 = vadd.f32 %v272, %v307
        %v338 = vadd.f32 %v273, %v307
        %v339 = vadd.f32 %v274, %v307
        %v340 = vadd.f32 %v275, %v307
        %v341 = vadd.f32 %v276, %v307
        %v342 = vadd.f32 %v277, %v307
        %v343 = vadd.f32 %v278, %v307
        %v344 = vadd.f32 %v279, %v307
        %v345 = vadd.f32 %v280, %v307
        %v346 = vadd.f32 %v281, %v307
        %v347 = vadd.f32 %v282, %v307
        %v348 = vadd.f32 %v283, %v307
        %v349 = vadd.f32 %v284, %v307
        %v350 = vadd.f32 %v285, %v307
        %v351 = vadd.f32 %v286, %v307
        %v352 = vadd.f32 %v287, %v307
        %v353 = vadd.f32 %v288, %v307
        %v354 = vadd.f32 %v289, %v307
        %v355 = vadd.f32 %v290, %v307
        %v356 = vadd.f32 %v291, %v307
        %v357 = vadd.f32 %v292, %v307
        %v358 = vadd.f32 %v293, %v307
        %v359 = vadd.f32 %v294, %v307
        %v360 = vadd.f32 %v295, %v307
        %v361 = vadd.f32 %v296, %v307
        %v362 = vadd.f32 %v297, %v307
        %v363 = vadd.f32 %v298, %v307
        %v364 = vadd.f32 %v299, %v307
        %v365 = vadd.f32 %v300, %v307
        %v366 = vadd.f32 %v301, %v307
        %v367 = vadd.f32 %v302, %v307
        %v368 = vadd.f32 %v303, %v307
        %v369 = vadd.f32 %v304, %v307
        %v370 = vadd.f32 %v305, %v307
        %v371 = vadd.f32 %v306, %v307
        %v372 = vmul.f32 %v308, 0.5
        %v373 = vmul.f32 %v309, 0.5
        %v374 = vmul.f32 %v310, 0.5
        %v375 = vmul.f32 %v311, 0.5
        %v376 = vmul.f32 %v312, 0.5
        %v377 = vmul.f32 %v313, 0.5
        %v378 = vmul.f32 %v314, 0.5
        %v379 = vmul.f32 %v315, 0.5
        %v380 = vmul.f32 %v316, 0.5
        %v381 = vmul.f32 %v317, 0.5
        %v382 = vmul.f32 %v318, 0.5
        %v383 = vmul.f32 %v319, 0.5
        %v384 = vmul.f32 %v320, 0.5
        %v385 = vmul.f32 %v321, 0.5
        %v386 = vmul.f32 %v322, 0.5
        %v387 = vmul.f32 %v323, 0.5
        %v388 = vmul.f32 %v324, 0.5
        %v389 = vmul.f32 %v325, 0.5
        %v390 = vmul.f32 %v326, 0.5
        %v391 = vmul.f32 %v327, 0.5
        %v392 = vmul.f32 %v328, 0.5
        %v393 = vmul.f32 %v329, 0.5
        %v394 = vmul.f32 %v330, 0.5
        %v395 = vmul.f32 %v331, 0.5
        %v396 = vmul.f32 %v332, 0.5
        %v397 = vmul.f32 %v333, 0.5
        %v398 = vmul.f32 %v334, 0.5
        %v399 = vmul.f32 %v335, 0.5
        %v400 = vmul.f32 %v336, 0.5
        %v401 = vmul.f32 %v337, 0.5
        %v402 = vmul.f32 %v338, 0.5
        %v403 = vmul.f32 %v339, 0.5
        %v404 = vmul.f32 %v340, 0.5
        %v405 = vmul.f32 %v341, 0.5
        %v406 = vmul.f32 %v342, 0.5
        %v407 = vmul.f32 %v343, 0.5
        %v408 = vmul.f32 %v344, 0.5
        %v409 = vmul.f32 %v345, 0.5
        %v410 = vmul.f32 %v346, 0.5
        %v411 = vmul.f32 %v347, 0.5
        %v412 = vmul.f32 %v348, 0.5
        %v413 = vmul.f32 %v349, 0.5
        %v414 = vmul.f32 %v350, 0.5
        %v415 = vmul.f32 %v351, 0.5
        %v416 = vmul.f32 %v352, 0.5
        %v417 = vmul.f32 %v353, 0.5
        %v418 = vmul.f32 %v354, 0.5
        %v419 = vmul.f32 %v355, 0.5
        %v420 = vmul.f32 %v356, 0.5
        %v421 = vmul.f32 %v357, 0.5
        %v422 = vmul.f32 %v358, 0.5
        %v423 = vmul.f32 %v359, 0.5
        %v424 = vmul.f32 %v360, 0.5
        %v425 = vmul.f32 %v361, 0.5
        %v426 = vmul.f32 %v362, 0.5
        %v427 = vmul.f32 %v363, 0.5
        %v428 = vmul.f32 %v364, 0.5
        %v429 = vmul.f32 %v365, 0.5
        %v430 = vmul.f32 %v366, 0.5
        %v431 = vmul.f32 %v367, 0.5
        %v432 = vmul.f32 %v368, 0.5
        %v433 = vmul.f32 %v369, 0.5
        %v434 = vmul.f32 %v370, 0.5
        %v435 = vmul.f32 %v371, 0.5
        %v436 = vtanh.pop %v372
        %v437 = vtanh.pop %v373
        %v438 = vtanh.pop %v374
        %v439 = vtanh.pop %v375
        %v440 = vtanh.pop %v376
        %v441 = vtanh.pop %v377
        %v442 = vtanh.pop %v378
        %v443 = vtanh.pop %v379
        %v444 = vtanh.pop %v380
        %v445 = vtanh.pop %v381
        %v446 = vtanh.pop %v382
        %v447 = vtanh.pop %v383
        %v448 = vtanh.pop %v384
        %v449 = vtanh.pop %v385
        %v450 = vtanh.pop %v386
        %v451 = vtanh.pop %v387
        %v452 = vtanh.pop %v388
        %v453 = vtanh.pop %v389
        %v454 = vtanh.pop %v390
        %v455 = vtanh.pop %v391
        %v456 = vtanh.pop %v392
        %v457 = vtanh.pop %v393
        %v458 = vtanh.pop %v394
        %v459 = vtanh.pop %v395
        %v460 = vtanh.pop %v396
        %v461 = vtanh.pop %v397
        %v462 = vtanh.pop %v398
        %v463 = vtanh.pop %v399
        %v464 = vtanh.pop %v400
        %v465 = vtanh.pop %v401
        %v466 = vtanh.pop %v402
        %v467 = vtanh.pop %v403
        %v468 = vtanh.pop %v404
        %v469 = vtanh.pop %v405
        %v470 = vtanh.pop %v406
        %v471 = vtanh.pop %v407
        %v472 = vtanh.pop %v408
        %v473 = vtanh.pop %v409
        %v474 = vtanh.pop %v410
        %v475 = vtanh.pop %v411
        %v476 = vtanh.pop %v412
        %v477 = vtanh.pop %v413
        %v478 = vtanh.pop %v414
        %v479 = vtanh.pop %v415
        %v480 = vtanh.pop %v416
        %v481 = vtanh.pop %v417
        %v482 = vtanh.pop %v418
        %v483 = vtanh.pop %v419
        %v484 = vtanh.pop %v420
        %v485 = vtanh.pop %v421
        %v486 = vtanh.pop %v422
        %v487 = vtanh.pop %v423
        %v488 = vtanh.pop %v424
        %v489 = vtanh.pop %v425
        %v490 = vtanh.pop %v426
        %v491 = vtanh.pop %v427
        %v492 = vtanh.pop %v428
        %v493 = vtanh.pop %v429
        %v494 = vtanh.pop %v430
        %v495 = vtanh.pop %v431
        %v496 = vtanh.pop %v432
        %v497 = vtanh.pop %v433
        %v498 = vtanh.pop %v434
        %v499 = vtanh.pop %v435
        %v500 = vmul.f32 %v436, 0.5
        %v501 = vmul.f32 %v437, 0.5
        %v502 = vmul.f32 %v438, 0.5
        %v503 = vmul.f32 %v439, 0.5
        %v504 = vmul.f32 %v440, 0.5
        %v505 = vmul.f32 %v441, 0.5
        %v506 = vmul.f32 %v442, 0.5
        %v507 = vmul.f32 %v443, 0.5
        %v508 = vmul.f32 %v444, 0.5
        %v509 = vmul.f32 %v445, 0.5
        %v510 = vmul.f32 %v446, 0.5
        %v511 = vmul.f32 %v447, 0.5
        %v512 = vmul.f32 %v448, 0.5
        %v513 = vmul.f32 %v449, 0.5
        %v514 = vmul.f32 %v450, 0.5
        %v515 = vmul.f32 %v451, 0.5
        %v516 = vmul.f32 %v452, 0.5
        %v517 = vmul.f32 %v453, 0.5
        %v518 = vmul.f32 %v454, 0.5
        %v519 = vmul.f32 %v455, 0.5
        %v520 = vmul.f32 %v456, 0.5
        %v521 = vmul.f32 %v457, 0.5
        %v522 = vmul.f32 %v458, 0.5
        %v523 = vmul.f32 %v459, 0.5
        %v524 = vmul.f32 %v460, 0.5
        %v525 = vmul.f32 %v461, 0.5
        %v526 = vmul.f32 %v462, 0.5
        %v527 = vmul.f32 %v463, 0.5
        %v528 = vmul.f32 %v464, 0.5
        %v529 = vmul.f32 %v465, 0.5
        %v530 = vmul.f32 %v466, 0.5
        %v531 = vmul.f32 %v467, 0.5
        %v532 = vmul.f32 %v468, 0.5
        %v533 = vmul.f32 %v469, 0.5
        %v534 = vmul.f32 %v470, 0.5
        %v535 = vmul.f32 %v471, 0.5
        %v536 = vmul.f32 %v472, 0.5
        %v537 = vmul.f32 %v473, 0.5
        %v538 = vmul.f32 %v474, 0.5
        %v539 = vmul.f32 %v475, 0.5
        %v540 = vmul.f32 %v476, 0.5
        %v541 = vmul.f32 %v477, 0.5
        %v542 = vmul.f32 %v478, 0.5
        %v543 = vmul.f32 %v479, 0.5
        %v544 = vmul.f32 %v480, 0.5
        %v545 = vmul.f32 %v481, 0.5
        %v546 = vmul.f32 %v482, 0.5
        %v547 = vmul.f32 %v483, 0.5
        %v548 = vmul.f32 %v484, 0.5
        %v549 = vmul.f32 %v485, 0.5
        %v550 = vmul.f32 %v486, 0.5
        %v551 = vmul.f32 %v487, 0.5
        %v552 = vmul.f32 %v488, 0.5
        %v553 = vmul.f32 %v489, 0.5
        %v554 = vmul.f32 %v490, 0.5
        %v555 = vmul.f32 %v491, 0.5
        %v556 = vmul.f32 %v492, 0.5
        %v557 = vmul.f32 %v493, 0.5
        %v558 = vmul.f32 %v494, 0.5
        %v559 = vmul.f32 %v495, 0.5
        %v560 = vmul.f32 %v496, 0.5
        %v561 = vmul.f32 %v497, 0.5
        %v562 = vmul.f32 %v498, 0.5
        %v563 = vmul.f32 %v499, 0.5
        %v564 = vadd.f32 %v500, 0.5
        %v565 = vadd.f32 %v501, 0.5
        %v566 = vadd.f32 %v502, 0.5
        %v567 = vadd.f32 %v503, 0.5
        %v568 = vadd.f32 %v504, 0.5
        %v569 = vadd.f32 %v505, 0.5
        %v570 = vadd.f32 %v506, 0.5
        %v571 = vadd.f32 %v507, 0.5
        %v572 = vadd.f32 %v508, 0.5
        %v573 = vadd.f32 %v509, 0.5
        %v574 = vadd.f32 %v510, 0.5
        %v575 = vadd.f32 %v511, 0.5
        %v576 = vadd.f32 %v512, 0.5
        %v577 = vadd.f32 %v513, 0.5
        %v578 = vadd.f32 %v514, 0.5
        %v579 = vadd.f32 %v515, 0.5
        %v580 = vadd.f32 %v516, 0.5
        %v581 = vadd.f32 %v517, 0.5
        %v582 = vadd.f32 %v518, 0.5
        %v583 = vadd.f32 %v519, 0.5
        %v584 = vadd.f32 %v520, 0.5
        %v585 = vadd.f32 %v521, 0.5
        %v586 = vadd.f32 %v522, 0.5
        %v587 = vadd.f32 %v523, 0.5
        %v588 = vadd.f32 %v524, 0.5
        %v589 = vadd.f32 %v525, 0.5
        %v590 = vadd.f32 %v526, 0.5
        %v591 = vadd.f32 %v527, 0.5
        %v592 = vadd.f32 %v528, 0.5
        %v593 = vadd.f32 %v529, 0.5
        %v594 = vadd.f32 %v530, 0.5
        %v595 = vadd.f32 %v531, 0.5
        %v596 = vadd.f32 %v532, 0.5
        %v597 = vadd.f32 %v533, 0.5
        %v598 = vadd.f32 %v534, 0.5
        %v599 = vadd.f32 %v535, 0.5
        %v600 = vadd.f32 %v536, 0.5
        %v601 = vadd.f32 %v537, 0.5
        %v602 = vadd.f32 %v538, 0.5
        %v603 = vadd.f32 %v539, 0.5
        %v604 = vadd.f32 %v540, 0.5
        %v605 = vadd.f32 %v541, 0.5
        %v606 = vadd.f32 %v542, 0.5
        %v607 = vadd.f32 %v543, 0.5
        %v608 = vadd.f32 %v544, 0.5
        %v609 = vadd.f32 %v545, 0.5
        %v610 = vadd.f32 %v546, 0.5
        %v611 = vadd.f32 %v547, 0.5
        %v612 = vadd.f32 %v548, 0.5
        %v613 = vadd.f32 %v549, 0.5
        %v614 = vadd.f32 %v550, 0.5
        %v615 = vadd.f32 %v551, 0.5
        %v616 = vadd.f32 %v552, 0.5
        %v617 = vadd.f32 %v553, 0.5
        %v618 = vadd.f32 %v554, 0.5
        %v619 = vadd.f32 %v555, 0.5
        %v620 = vadd.f32 %v556, 0.5
        %v621 = vadd.f32 %v557, 0.5
        %v622 = vadd.f32 %v558, 0.5
        %v623 = vadd.f32 %v559, 0.5
        %v624 = vadd.f32 %v560, 0.5
        %v625 = vadd.f32 %v561, 0.5
        %v626 = vadd.f32 %v562, 0.5
        %v627 = vadd.f32 %v563, 0.5
        %628 = vst [vmem:[%s173] sm:$0xff] %v564
        %629 = vst [vmem:[%s173 + $0x8] sm:$0xff] %v565
        %630 = vst [vmem:[%s173 + $0x10] sm:$0xff] %v566
        %631 = vst [vmem:[%s173 + $0x18] sm:$0xff] %v567
        %632 = vst [vmem:[%s173 + $0x20] sm:$0xff] %v568
        %633 = vst [vmem:[%s173 + $0x28] sm:$0xff] %v569
        %634 = vst [vmem:[%s173 + $0x30] sm:$0xff] %v570
        %635 = vst [vmem:[%s173 + $0x38] sm:$0xff] %v571
        %636 = vst [vmem:[%s173 + $0x40] sm:$0xff] %v572
        %637 = vst [vmem:[%s173 + $0x48] sm:$0xff] %v573
        %638 = vst [vmem:[%s173 + $0x50] sm:$0xff] %v574
        %639 = vst [vmem:[%s173 + $0x58] sm:$0xff] %v575
        %640 = vst [vmem:[%s173 + $0x60] sm:$0xff] %v576
        %641 = vst [vmem:[%s173 + $0x68] sm:$0xff] %v577
        %642 = vst [vmem:[%s173 + $0x70] sm:$0xff] %v578
        %643 = vst [vmem:[%s173 + $0x78] sm:$0xff] %v579
        %644 = vst [vmem:[%s173 + $0x80] sm:$0xff] %v580
        %645 = vst [vmem:[%s173 + $0x88] sm:$0xff] %v581
        %646 = vst [vmem:[%s173 + $0x90] sm:$0xff] %v582
        %647 = vst [vmem:[%s173 + $0x98] sm:$0xff] %v583
        %648 = vst [vmem:[%s173 + $0xa0] sm:$0xff] %v584
        %649 = vst [vmem:[%s173 + $0xa8] sm:$0xff] %v585
        %650 = vst [vmem:[%s173 + $0xb0] sm:$0xff] %v586
        %651 = vst [vmem:[%s173 + $0xb8] sm:$0xff] %v587
        %652 = vst [vmem:[%s173 + $0xc0] sm:$0xff] %v588
        %653 = vst [vmem:[%s173 + $0xc8] sm:$0xff] %v589
        %654 = vst [vmem:[%s173 + $0xd0] sm:$0xff] %v590
        %655 = vst [vmem:[%s173 + $0xd8] sm:$0xff] %v591
        %656 = vst [vmem:[%s173 + $0xe0] sm:$0xff] %v592
        %657 = vst [vmem:[%s173 + $0xe8] sm:$0xff] %v593
        %658 = vst [vmem:[%s173 + $0xf0] sm:$0xff] %v594
        %659 = vst [vmem:[%s173 + $0xf8] sm:$0xff] %v595
        %660 = vst [vmem:[%s173 + $0x100] sm:$0xff] %v596
        %661 = vst [vmem:[%s173 + $0x108] sm:$0xff] %v597
        %662 = vst [vmem:[%s173 + $0x110] sm:$0xff] %v598
        %663 = vst [vmem:[%s173 + $0x118] sm:$0xff] %v599
        %664 = vst [vmem:[%s173 + $0x120] sm:$0xff] %v600
        %665 = vst [vmem:[%s173 + $0x128] sm:$0xff] %v601
        %666 = vst [vmem:[%s173 + $0x130] sm:$0xff] %v602
        %667 = vst [vmem:[%s173 + $0x138] sm:$0xff] %v603
        %668 = vst [vmem:[%s173 + $0x140] sm:$0xff] %v604
        %669 = vst [vmem:[%s173 + $0x148] sm:$0xff] %v605
        %670 = vst [vmem:[%s173 + $0x150] sm:$0xff] %v606
        %671 = vst [vmem:[%s173 + $0x158] sm:$0xff] %v607
        %672 = vst [vmem:[%s173 + $0x160] sm:$0xff] %v608
        %673 = vst [vmem:[%s173 + $0x168] sm:$0xff] %v609
        %674 = vst [vmem:[%s173 + $0x170] sm:$0xff] %v610
        %675 = vst [vmem:[%s173 + $0x178] sm:$0xff] %v611
        %676 = vst [vmem:[%s173 + $0x180] sm:$0xff] %v612
        %677 = vst [vmem:[%s173 + $0x188] sm:$0xff] %v613
        %678 = vst [vmem:[%s173 + $0x190] sm:$0xff] %v614
        %679 = vst [vmem:[%s173 + $0x198] sm:$0xff] %v615
        %680 = vst [vmem:[%s173 + $0x1a0] sm:$0xff] %v616
        %681 = vst [vmem:[%s173 + $0x1a8] sm:$0xff] %v617
        %682 = vst [vmem:[%s173 + $0x1b0] sm:$0xff] %v618
        %683 = vst [vmem:[%s173 + $0x1b8] sm:$0xff] %v619
        %684 = vst [vmem:[%s173 + $0x1c0] sm:$0xff] %v620
        %685 = vst [vmem:[%s173 + $0x1c8] sm:$0xff] %v621
        %686 = vst [vmem:[%s173 + $0x1d0] sm:$0xff] %v622
        %687 = vst [vmem:[%s173 + $0x1d8] sm:$0xff] %v623
        %688 = vst [vmem:[%s173 + $0x1e0] sm:$0xff] %v624
        %689 = vst [vmem:[%s173 + $0x1e8] sm:$0xff] %v625
        %690 = vst [vmem:[%s173 + $0x1f0] sm:$0xff] %v626
        %691 = vst [vmem:[%s173 + $0x1f8] sm:$0xff] %v627
        %s692 = sand.u32 %s75, 1
        %s693 = scalar_lea.sflag [#allocation4], %s692
        %s694 = sand.u32 %s75, 1
        %s695 = smul.addr %s694, 512
        %s696 = scalar_lea.vmem [#allocation7], %s695
        // Predicated region
        $region37: #{tpu_custom_call.1} parent=27 // pred_check
          %p697 = pneg %p85
        $region38: #{tpu_custom_call.1} parent=27 // pred_check_branch
          %699 = sbr.rel (%p697) target = $region40
        $region39: #{tpu_custom_call.1} parent=27 // pred_region
          %s700 = smul.u32 64, %s20
          %s702 = ssub.s32 8192, 8192
          %703 = vsyncadd %s693, %s702
          %s704 = smul.addr %s700, 128
          %s705 = scalar_lea.hbm %s2, %s704
          %s706 = sshll.u32 %s696, 4
          %s707 = int_to_ptr.vmem [resolvable:$true] %s706
          %712 = dma.vmem_to_hbm [thread:$0]  %s707, 8192, %s705, %s693, 128, 128, 8
        $region40: #{tpu_custom_call.1} parent=27 // pred_fallthru
          _
      $region28: #{tpu_custom_call.1} parent=5 // pred_fallthru
        _
      %p713 = scmp.le.s32.totalorder 2, %s15
      // Predicated region
      $region41: #{tpu_custom_call.1} parent=5 // pred_check
        %p714 = pneg %p713
      $region42: #{tpu_custom_call.1} parent=5 // pred_check_branch
        %716 = sbr.rel (%p714) target = $region44
      $region43: #{tpu_custom_call.1} parent=5 // pred_region
        %s717 = ssub.s32 %s15, 2
        // Predicated region
        $region45: #{tpu_custom_call.1} parent=43 // pred_check
          %p718 = pneg %p91
        $region46: #{tpu_custom_call.1} parent=43 // pred_check_branch
          %720 = sbr.rel (%p718) target = $region48
        $region47: #{tpu_custom_call.1} parent=43 // pred_region
          %s721 = sand.u32 %s76, 1
          %s722 = scalar_lea.sflag [#allocation4], %s721
          %s723 = sand.u32 %s76, 1
          %s724 = smul.addr %s723, 512
          %s725 = scalar_lea.vmem [#allocation7], %s724
          %726 = dma.done %s722, 8192
        $region48: #{tpu_custom_call.1} parent=43 // pred_fallthru
          _
      $region44: #{tpu_custom_call.1} parent=5 // pred_fallthru
        _
    $region6: #{tpu_custom_call.1} parent=1 // loop_footer
      %s19 = sadd.s32 1, %s15
    $region7: #{tpu_custom_call.1} parent=1 // loop_footer_branch
      %14 = sbr.rel target = $region3
    $region8: #{tpu_custom_call.1} parent=1 // loop_exit
      _
    %727 = vsyncpa [#allocation3], 1
    %s728 = scalar_lea.sflag [#allocation3], 1
    %729 = vsyncpa %s728, 1
    %730 = vsyncpa [#allocation4], 1
    %s731 = scalar_lea.sflag [#allocation4], 1
    %732 = vsyncpa %s731, 1
    %733 = vsyncpa [#allocation5], 1
    %s734 = scalar_lea.sflag [#allocation5], 1
    %735 = vsyncpa %s734, 1

</llo_original>
